<compile_context>
chip_gen: v7x
topology: tpu7x:2x2x1
jax: 0.10.0
libtpu: 0.0.40
codegen_flags: <defaults>
</compile_context>

<pallas_src>
import jax
import jax.numpy as jnp
from jax import lax
from jax.experimental import pallas as pl
from jax.experimental.pallas import tpu as pltpu

_EPS = 1e-8  # torch.nn.CosineSimilarity default eps


def _cos_sim_kernel(top_ref, mid_ref, bot_ref, o_ref):
    # top_ref: (1, Wpad, C)      row  i*tile_h - 1  (clamped; zeroed below for tile 0)
    # mid_ref: (tile_h, Wpad, C) rows [i*tile_h, i*tile_h + tile_h)
    # bot_ref: (1, Wpad, C)      row  (i+1)*tile_h  (a zero pad row for the last tile)
    # o_ref:   (1, tile_h, Wpad)
    i = pl.program_id(0)
    th = mid_ref.shape[0]
    wpad = mid_ref.shape[1]

    # Row above the image does not exist for the first tile -> zero halo.
    x_top = jnp.where(i > 0, top_ref[...], 0.0)
    xw = jnp.concatenate([x_top, mid_ref[...], bot_ref[...]], axis=0)   # (th+2, Wpad, C)

    # Per-pixel normalization: one rsqrt (EUP) + one VPU multiply.  Zero-padded
    # pixels stay exactly zero, so every boundary mask of the reference is
    # implicit (a zero neighbor contributes exactly 0 to the dot product).
    norm2 = jnp.sum(xw * xw, axis=-1, keepdims=True)                    # (th+2, Wpad, 1)
    xn = xw * lax.rsqrt(jnp.maximum(norm2, _EPS * _EPS))

    # Vertical (H) neighbor sum first (operates on th rows only), then the two
    # horizontal (W) +-1 shifts as non-negative sublane rolls
    # (shift = Wpad-1 == -1 mod Wpad); the zero separator columns at [W, Wpad)
    # absorb both wrap-arounds.
    xv = xn[0:th] + xn[2:th + 2]                                        # (th, Wpad, C)
    s = pltpu.roll(xv, shift=1, axis=1) + pltpu.roll(xv, shift=wpad - 1, axis=1)

    # Single dot product per pixel (linearity over the 4 diagonal neighbors);
    # the C reduction is a cross-lane reduce, the store is the full lane slab.
    o_ref[0] = jnp.sum(xn[1:th + 1] * s, axis=-1)                       # (th, Wpad)


def cosine_similarity_map(input_image, *, tile_h=None):
    """input_image: [H, W, 1, C] -> similarity map [H, W] float32."""
    H, W = int(input_image.shape[0]), int(input_image.shape[1])
    C = int(input_image.shape[-1])
    x = jnp.asarray(input_image, jnp.float32).reshape(H, W, C)

    # Natural (H, W, C) layout: C on lanes (block spans the full C dim -> no C
    # padding), W on sublanes padded to a multiple of 8 and >= W + 1 so there is
    # at least one zero separator column for the +-1 W shifts.  No host transpose.
    wpad = -(-(W + 1) // 8) * 8
    bytes_per_row = wpad * C * 4

    if tile_h is None:
        # >= 8 MiB of input payload per grid step (amortizes the ~0.35 us step
        # overhead), capped so ~10 window-sized live buffers (in-kernel temps +
        # double-buffered I/O) stay inside a v7x-safe ~40 MiB VMEM budget.
        target_rows = (8 * 1024 * 1024) // bytes_per_row
        vmem_rows = (40 * 1024 * 1024) // (10 * bytes_per_row) - 2
        tile_h = max(1, min(target_rows, vmem_rows))
        # At least two row tiles so the "parallel" axis can shard across both
        # v7x TensorCores (no effect on single-TC v5e/v6e).
        if tile_h >= H and H >= 2:
            tile_h = -(-H // 2)
    tile_h = max(1, min(int(tile_h), H))

    nb = -(-H // tile_h)            # number of row tiles
    hpad = nb * tile_h

    # Single fused pad -- the only host-side pass (no transpose, no tile stack):
    # valid data at [:H, :W], zero rows at [H, hpad] and zero cols at [W, wpad).
    xp = jnp.pad(x, ((0, hpad + 1 - H), (0, wpad - W), (0, 0)))

    window_bytes = (tile_h + 2) * bytes_per_row
    vmem_limit = int(min(48 * 1024 * 1024, max(32 * 1024 * 1024, 12 * window_bytes)))

    out = pl.pallas_call(
        _cos_sim_kernel,
        out_shape=jax.ShapeDtypeStruct((nb, tile_h, wpad), jnp.float32),
        grid=(nb,),
        in_specs=[
            # 1-row halo above (index clamped at the image top; zeroed in-kernel
            # for tile 0).
            pl.BlockSpec((1, wpad, C),
                         lambda i: (jnp.maximum(i * tile_h - 1, 0), 0, 0)),
            # The tile itself: non-overlapping -> standard pipelined Blocked spec.
            pl.BlockSpec((tile_h, wpad, C), lambda i: (i, 0, 0)),
            # 1-row halo below (row hpad is a zero pad row, so always in range).
            pl.BlockSpec((1, wpad, C), lambda i: ((i + 1) * tile_h, 0, 0)),
        ],
        out_specs=pl.BlockSpec((1, tile_h, wpad), lambda i: (i, 0, 0)),
        compiler_params=pltpu.CompilerParams(
            dimension_semantics=("parallel",),   # independent row tiles
            vmem_limit_bytes=vmem_limit),
    )(xp, xp, xp)

    return out.reshape(hpad, wpad)[:H, :W]


def _reference_numpy(input_image):
    """Direct port of the PyTorch double loop (numpy), for verification."""
    import numpy as np
    x = np.asarray(input_image, np.float32)
    H, W, C = x.shape[0], x.shape[1], x.shape[-1]
    x = x.reshape(H, W, C)
    xp = np.zeros((H + 1, W + 1, C), np.float32)
    xp[:H, :W] = x
    out = np.empty((H, W), np.float32)
    for m in range(H):
        for n in range(W):
            s = 0.0
            for l in (-1, 1):
                for k in (-1, 1):
                    mask = float((n + l >= 0) and (m + k >= 0)
                                 and (m + k < H) and (n + l < W))
                    a = xp[m, n]
                    b = xp[(m + k) % (H + 1), (n + l) % (W + 1)]
                    cs = float(a @ b) / (max(float(np.linalg.norm(a)), _EPS)
                                         * max(float(np.linalg.norm(b)), _EPS))
                    s += mask * cs
            out[m, n] = s
    return out


if __name__ == "__main__":
    import numpy as np

    # Module's forward implies input shape [H, W, 1, C].
    # Case 1: multi-tile grid with explicit tile_h=8 (2 grid steps, halo logic).
    # Case 2: odd H/W/C with auto tiling (tile_h=7, 2 tiles, clamp/zero paths).
    for (H, W, C, th) in [(16, 16, 32, 8), (13, 10, 20, None)]:
        key = jax.random.PRNGKey(0)
        input_image = jax.random.normal(key, (H, W, 1, C), dtype=jnp.float32)

        sim_map = cosine_similarity_map(input_image, tile_h=th)
        sim_map = jax.block_until_ready(sim_map)

        ref = _reference_numpy(np.asarray(input_image))
        np.testing.assert_allclose(np.asarray(sim_map), ref, rtol=1e-4, atol=1e-4)

    print("KERNEL_OK")
</pallas_src>

<mosaic_0001>
module attributes {stable_mosaic.version = 11 : i64} {
  func.func @_cos_sim_kernel(%arg0: i32, %arg1: memref<1x24x32xf32, #tpu.memory_space<vmem>>, %arg2: memref<8x24x32xf32, #tpu.memory_space<vmem>>, %arg3: memref<1x24x32xf32, #tpu.memory_space<vmem>>, %arg4: memref<1x8x24xf32, #tpu.memory_space<vmem>>) attributes {dimension_semantics = [#tpu.dimension_semantics<parallel>], iteration_bounds = array<i64: 2>, scalar_prefetch = 0 : i64, scratch_operands = 0 : i64, tpu.core_type = #tpu.core_type<tc>, window_params = [{transform_indices = @transform_0, window_bounds = array<i64: 1, 24, 32>}, {transform_indices = @transform_1, window_bounds = array<i64: 8, 24, 32>}, {transform_indices = @transform_2, window_bounds = array<i64: 1, 24, 32>}, {transform_indices = @transform_3, window_bounds = array<i64: 1, 8, 24>}]} {
    %c0_i32 = arith.constant 0 : i32
    %0 = arith.cmpi sgt, %arg0, %c0_i32 : i32
    %c0 = arith.constant 0 : index
    %c0_0 = arith.constant 0 : index
    %c0_1 = arith.constant 0 : index
    %1 = vector.load %arg1[%c0, %c0_0, %c0_1] : memref<1x24x32xf32, #tpu.memory_space<vmem>>, vector<1x24x32xf32>
    %cst = arith.constant 0.000000e+00 : f32
    %2 = vector.broadcast %cst : f32 to vector<1x24x32xf32>
    %3 = arith.select %0, %1, %2 : vector<1x24x32xf32>
    %c0_2 = arith.constant 0 : index
    %c0_3 = arith.constant 0 : index
    %c0_4 = arith.constant 0 : index
    %4 = vector.load %arg2[%c0_2, %c0_3, %c0_4] : memref<8x24x32xf32, #tpu.memory_space<vmem>>, vector<8x24x32xf32>
    %c0_5 = arith.constant 0 : index
    %c0_6 = arith.constant 0 : index
    %c0_7 = arith.constant 0 : index
    %5 = vector.load %arg3[%c0_5, %c0_6, %c0_7] : memref<1x24x32xf32, #tpu.memory_space<vmem>>, vector<1x24x32xf32>
    %6 = tpu.concatenate %3, %4, %5 in 0 : vector<1x24x32xf32>, vector<8x24x32xf32>, vector<1x24x32xf32> -> vector<10x24x32xf32>
    %7 = arith.mulf %6, %6 : vector<10x24x32xf32>
    %cst_8 = arith.constant dense<0.000000e+00> : vector<10x24xf32>
    %8 = vector.multi_reduction <add>, %7, %cst_8 [2] : vector<10x24x32xf32> to vector<10x24xf32>
    %9 = vector.shape_cast %8 : vector<10x24xf32> to vector<10x24x1xf32>
    %cst_9 = arith.constant 1.000000e-16 : f32
    %10 = vector.broadcast %cst_9 : f32 to vector<10x24x1xf32>
    %11 = arith.maximumf %9, %10 : vector<10x24x1xf32>
    %12 = math.rsqrt %11 : vector<10x24x1xf32>
    %13 = vector.broadcast %12 : vector<10x24x1xf32> to vector<10x24x32xf32>
    %14 = arith.mulf %6, %13 : vector<10x24x32xf32>
    %15 = vector.extract_strided_slice %14 {offsets = [0, 0, 0], sizes = [8, 24, 32], strides = [1, 1, 1]} : vector<10x24x32xf32> to vector<8x24x32xf32>
    %16 = vector.extract_strided_slice %14 {offsets = [2, 0, 0], sizes = [8, 24, 32], strides = [1, 1, 1]} : vector<10x24x32xf32> to vector<8x24x32xf32>
    %17 = arith.addf %15, %16 : vector<8x24x32xf32>
    %c1_i32 = arith.constant 1 : i32
    %18 = tpu.dynamic_rotate %17 by %c1_i32 dim 1 : vector<8x24x32xf32>, i32 -> vector<8x24x32xf32>
    %c23_i32 = arith.constant 23 : i32
    %19 = tpu.dynamic_rotate %17 by %c23_i32 dim 1 : vector<8x24x32xf32>, i32 -> vector<8x24x32xf32>
    %20 = arith.addf %18, %19 : vector<8x24x32xf32>
    %21 = vector.extract_strided_slice %14 {offsets = [1, 0, 0], sizes = [8, 24, 32], strides = [1, 1, 1]} : vector<10x24x32xf32> to vector<8x24x32xf32>
    %22 = arith.mulf %21, %20 : vector<8x24x32xf32>
    %cst_10 = arith.constant dense<0.000000e+00> : vector<8x24xf32>
    %23 = vector.multi_reduction <add>, %22, %cst_10 [2] : vector<8x24x32xf32> to vector<8x24xf32>
    %c0_11 = arith.constant 0 : index
    %c0_12 = arith.constant 0 : index
    %c0_13 = arith.constant 0 : index
    %24 = vector.load %arg4[%c0_11, %c0_12, %c0_13] : memref<1x8x24xf32, #tpu.memory_space<vmem>>, vector<1x8x24xf32>
    %25 = vector.shape_cast %24 : vector<1x8x24xf32> to vector<8x24xf32>
    %26 = vector.shape_cast %23 : vector<8x24xf32> to vector<1x8x24xf32>
    tpu.vector_store %arg4[%c0_11, %c0_12, %c0_13], %26 {strides = array<i32>} : memref<1x8x24xf32, #tpu.memory_space<vmem>>, vector<1x8x24xf32>,
    return
  }
  func.func @transform_0(%arg0: i32) -> (i32, i32, i32) {
    %c8_i32 = arith.constant 8 : i32
    %0 = arith.muli %arg0, %c8_i32 : i32
    %c1_i32 = arith.constant 1 : i32
    %1 = arith.subi %0, %c1_i32 : i32
    %c0_i32 = arith.constant 0 : i32
    %2 = arith.maxsi %1, %c0_i32 : i32
    %c0_i32_0 = arith.constant 0 : i32
    %c0_i32_1 = arith.constant 0 : i32
    %c0_i32_2 = arith.constant 0 : i32
    return %2, %c0_i32_0, %c0_i32_1 : i32, i32, i32
  }
  func.func @transform_1(%arg0: i32) -> (i32, i32, i32) {
    %c0_i32 = arith.constant 0 : i32
    %c0_i32_0 = arith.constant 0 : i32
    %c0_i32_1 = arith.constant 0 : i32
    return %arg0, %c0_i32, %c0_i32_0 : i32, i32, i32
  }
  func.func @transform_2(%arg0: i32) -> (i32, i32, i32) {
    %c1_i32 = arith.constant 1 : i32
    %0 = arith.addi %arg0, %c1_i32 : i32
    %c8_i32 = arith.constant 8 : i32
    %1 = arith.muli %0, %c8_i32 : i32
    %c0_i32 = arith.constant 0 : i32
    %c0_i32_0 = arith.constant 0 : i32
    %c0_i32_1 = arith.constant 0 : i32
    return %1, %c0_i32, %c0_i32_0 : i32, i32, i32
  }
  func.func @transform_3(%arg0: i32) -> (i32, i32, i32) {
    %c0_i32 = arith.constant 0 : i32
    %c0_i32_0 = arith.constant 0 : i32
    %c0_i32_1 = arith.constant 0 : i32
    return %arg0, %c0_i32, %c0_i32_0 : i32, i32, i32
  }
}

</mosaic_0001>

<llo_original>
// kernel: tpu_custom_call.1
$region0: #{tpu_custom_call.1}
  #allocation0 [shape = 'u32[]', space=smem, size = 0x4, offset = 0x4, fixed_abs, tag = 'smem constant byte address 0x4 - core index']
  #allocation1 [shape = 'u32[144,128]{1,0:T(1,128)}', space=vmem, size = 0x12000, scoped, tag = 'internal scratch']
  %s0 = inlined_call_operand.hbm [shape: f32[17,24,32], index: 0, kind: input, shape index: {}]
  %s1 = inlined_call_operand.hbm [shape: f32[17,24,32], index: 1, kind: input, shape index: {}]
  %s2 = inlined_call_operand.hbm [shape: f32[17,24,32], index: 2, kind: input, shape index: {}]
  %s3 = inlined_call_operand.hbm [shape: f32[2,8,24], index: 3, kind: output, shape index: {}]
  %s4 = sld [smem:[#allocation0]]
  $region57: #{tpu_custom_call.1} parent=0
    _
  %s6 = ssub.s32 1, %s4
  %s7 = scalar_select 0, %s6, %s4
  $region1: #{tpu_custom_call.1} parent=0
    #allocation2 [shape = 'u8[24576]{0}', space=vmem, size = 0x6000, scoped, tag = 'input window, operand 0']
    #allocation3 [shape = 's32[2]{0}', space=sflag, size = 0x8, scoped, tag = 'scoped memory for tpu_custom_call.1']
    #allocation4 [shape = 's32[2]{0}', space=sflag, size = 0x8, scoped, tag = 'scoped memory for tpu_custom_call.1']
    #allocation5 [shape = 'u8[196608]{0}', space=vmem, size = 0x30000, scoped, tag = 'input window, operand 1']
    #allocation6 [shape = 's32[2]{0}', space=sflag, size = 0x8, scoped, tag = 'scoped memory for tpu_custom_call.1']
    #allocation7 [shape = 'u8[24576]{0}', space=vmem, size = 0x6000, scoped, tag = 'input window, operand 2']
    #allocation8 [shape = 'u8[8192]{0}', space=vmem, size = 0x2000, scoped, tag = 'output window, operand 0']
    %8 = vsyncpa [#allocation3], 0
    %s9 = scalar_lea.sflag [#allocation3], 1
    %10 = vsyncpa %s9, 0
    %11 = vsyncpa [#allocation6], 0
    %s12 = scalar_lea.sflag [#allocation6], 1
    %13 = vsyncpa %s12, 0
    %14 = vsyncpa [#allocation4], 0
    %s15 = scalar_lea.sflag [#allocation4], 1
    %16 = vsyncpa %s15, 0
    loop: start=0, step=1, limit=4
    $region2: #{tpu_custom_call.1} parent=1 // loop_pre_header
      _
    $region3: #{tpu_custom_call.1} parent=1 // loop_header
      %s18 = sphi 0, %s22
      %p19 = scmp.ge.s32.totalorder %s18, 4
      %s36 = sphi 0, %s38
      %s39 = sphi 0, %s36
      %s40 = sphi 0, %s39
      %s56 = sphi 0, %s40
      %s62 = sphi 0, %s64
      %s65 = sphi 0, %s62
      %s66 = sphi 0, %s65
      %s82 = sphi 0, %s66
      %s92 = sphi 0, %s94
      %s95 = sphi 0, %s92
      %s96 = sphi 0, %s95
      %s112 = sphi 0, %s96
      %s118 = sphi 0, %s120
      %s121 = sphi 0, %s118
      %s122 = sphi 0, %s121
      %s138 = sphi 0, %s122
    $region4: #{tpu_custom_call.1} parent=1 // loop_header_branch
      %21 = sbr.rel (%p19) target = $region8
    $region5: #{tpu_custom_call.1} parent=1 // loop_body
      %s23 = ssub.s32 %s18, 1
      %s24 = ssub.s32 %s18, 2
      %s25 = sadd.s32 %s18, 1
      %s26 = smul.u32 %s18, 8
      %s27 = ssub.s32 %s26, 1
      %p28 = scmp.gt.s32.totalorder %s27, 0
      %s29 = scalar_select %p28, %s27, 0
      %s30 = smul.u32 %s25, 8
      %s31 = ssub.s32 %s30, 1
      %p32 = scmp.gt.s32.totalorder %s31, 0
      %s33 = scalar_select %p32, %s31, 0
      %s34 = ssub.s32 %s29, %s33
      %p35 = scmp.eq.s32.totalorder %s34, 0
      %s37 = sadd.s32 %s36, 1
      %s38 = scalar_select %p35, %s36, %s37
      %p41 = pneg %p35
      %p42 = scmp.eq.s32.totalorder %s18, 1
      %p43 = por %p41, %p42
      %p44 = scmp.ne.s32.totalorder %s36, %s39
      %p45 = scmp.eq.s32.totalorder %s18, 0
      %p46 = por %p44, %p45
      %p47 = scmp.ne.s32.totalorder %s36, %s39
      %p48 = scmp.eq.s32.totalorder %s23, 1
      %p49 = por %p47, %p48
      %p50 = scmp.ne.s32.totalorder %s39, %s40
      %p51 = scmp.eq.s32.totalorder %s23, 0
      %p52 = por %p50, %p51
      %p53 = scmp.ne.s32.totalorder %s39, %s40
      %p54 = scmp.eq.s32.totalorder %s24, 1
      %p55 = por %p53, %p54
      %p57 = scmp.ne.s32.totalorder %s40, %s56
      %p58 = scmp.eq.s32.totalorder %s24, 0
      %p59 = por %p57, %p58
      %s60 = ssub.s32 %s18, %s25
      %p61 = scmp.eq.s32.totalorder %s60, 0
      %s63 = sadd.s32 %s62, 1
      %s64 = scalar_select %p61, %s62, %s63
      %p67 = pneg %p61
      %p68 = scmp.eq.s32.totalorder %s18, 1
      %p69 = por %p67, %p68
      %p70 = scmp.ne.s32.totalorder %s62, %s65
      %p71 = scmp.eq.s32.totalorder %s18, 0
      %p72 = por %p70, %p71
      %p73 = scmp.ne.s32.totalorder %s62, %s65
      %p74 = scmp.eq.s32.totalorder %s23, 1
      %p75 = por %p73, %p74
      %p76 = scmp.ne.s32.totalorder %s65, %s66
      %p77 = scmp.eq.s32.totalorder %s23, 0
      %p78 = por %p76, %p77
      %p79 = scmp.ne.s32.totalorder %s65, %s66
      %p80 = scmp.eq.s32.totalorder %s24, 1
      %p81 = por %p79, %p80
      %p83 = scmp.ne.s32.totalorder %s66, %s82
      %p84 = scmp.eq.s32.totalorder %s24, 0
      %p85 = por %p83, %p84
      %s86 = sadd.s32 %s18, 1
      %s87 = smul.u32 %s86, 8
      %s88 = sadd.s32 %s25, 1
      %s89 = smul.u32 %s88, 8
      %s90 = ssub.s32 %s87, %s89
      %p91 = scmp.eq.s32.totalorder %s90, 0
      %s93 = sadd.s32 %s92, 1
      %s94 = scalar_select %p91, %s92, %s93
      %p97 = pneg %p91
      %p98 = scmp.eq.s32.totalorder %s18, 1
      %p99 = por %p97, %p98
      %p100 = scmp.ne.s32.totalorder %s92, %s95
      %p101 = scmp.eq.s32.totalorder %s18, 0
      %p102 = por %p100, %p101
      %p103 = scmp.ne.s32.totalorder %s92, %s95
      %p104 = scmp.eq.s32.totalorder %s23, 1
      %p105 = por %p103, %p104
      %p106 = scmp.ne.s32.totalorder %s95, %s96
      %p107 = scmp.eq.s32.totalorder %s23, 0
      %p108 = por %p106, %p107
      %p109 = scmp.ne.s32.totalorder %s95, %s96
      %p110 = scmp.eq.s32.totalorder %s24, 1
      %p111 = por %p109, %p110
      %p113 = scmp.ne.s32.totalorder %s96, %s112
      %p114 = scmp.eq.s32.totalorder %s24, 0
      %p115 = por %p113, %p114
      %s116 = ssub.s32 %s18, %s25
      %p117 = scmp.eq.s32.totalorder %s116, 0
      %s119 = sadd.s32 %s118, 1
      %s120 = scalar_select %p117, %s118, %s119
      %p123 = pneg %p117
      %p124 = scmp.eq.s32.totalorder %s18, 1
      %p125 = por %p123, %p124
      %p126 = scmp.ne.s32.totalorder %s118, %s121
      %p127 = scmp.eq.s32.totalorder %s18, 0
      %p128 = por %p126, %p127
      %p129 = scmp.ne.s32.totalorder %s118, %s121
      %p130 = scmp.eq.s32.totalorder %s23, 1
      %p131 = por %p129, %p130
      %p132 = scmp.ne.s32.totalorder %s121, %s122
      %p133 = scmp.eq.s32.totalorder %s23, 0
      %p134 = por %p132, %p133
      %p135 = scmp.ne.s32.totalorder %s121, %s122
      %p136 = scmp.eq.s32.totalorder %s24, 1
      %p137 = por %p135, %p136
      %p139 = scmp.ne.s32.totalorder %s122, %s138
      %p140 = scmp.eq.s32.totalorder %s24, 0
      %p141 = por %p139, %p140
      %p142 = scmp.le.s32.totalorder 1, %s18
      %p143 = scmp.lt.s32.totalorder %s18, 3
      %p144 = pnand %p142, %p143
      %p145 = pneg %p144
      // Predicated region
      $region9: #{tpu_custom_call.1} parent=5 // pred_check
        _
      $region10: #{tpu_custom_call.1} parent=5 // pred_check_branch
        %147 = sbr.rel (%p144) target = $region12
      $region11: #{tpu_custom_call.1} parent=5 // pred_region
        %s148 = ssub.s32 %s18, 1
      $region12: #{tpu_custom_call.1} parent=5 // pred_fallthru
        _
      %p149 = scmp.lt.s32.totalorder %s18, 2
      // Predicated region
      $region13: #{tpu_custom_call.1} parent=5 // pred_check
        %p150 = pneg %p149
      $region14: #{tpu_custom_call.1} parent=5 // pred_check_branch
        %152 = sbr.rel (%p150) target = $region16
      $region15: #{tpu_custom_call.1} parent=5 // pred_region
        // Predicated region
        $region17: #{tpu_custom_call.1} parent=15 // pred_check
          %p153 = pneg %p46
        $region18: #{tpu_custom_call.1} parent=15 // pred_check_branch
          %155 = sbr.rel (%p153) target = $region20
        $region19: #{tpu_custom_call.1} parent=15 // pred_region
          %s156 = sand.u32 %s36, 1
          %s157 = scalar_lea.sflag [#allocation3], %s156
          %s158 = sand.u32 %s36, 1
          %s159 = smul.addr %s158, 24
          %s160 = scalar_lea.vmem [#allocation2], %s159
          %s161 = smul.u32 %s18, 8
          %s162 = ssub.s32 %s161, 1
          %p163 = scmp.gt.s32.totalorder %s162, 0
          %s164 = scalar_select %p163, %s162, 0
          %s166 = ssub.s32 384, 384
          %167 = vsyncadd %s157, %s166
          %s168 = smul.addr %s164, 3
          %s169 = smul.addr %s168, 128
          %s170 = scalar_lea.hbm %s0, %s169
          %s171 = sshll.u32 %s160, 4
          %s172 = int_to_ptr.vmem [resolvable:$true] %s171
          %177 = dma.hbm_to_vmem [thread:$0]  %s170, 384, %s172, %s157, 128, 128, 8
        $region20: #{tpu_custom_call.1} parent=15 // pred_fallthru
          _
        // Predicated region
        $region21: #{tpu_custom_call.1} parent=15 // pred_check
          %p178 = pneg %p72
        $region22: #{tpu_custom_call.1} parent=15 // pred_check_branch
          %180 = sbr.rel (%p178) target = $region24
        $region23: #{tpu_custom_call.1} parent=15 // pred_region
          %s181 = sand.u32 %s18, 1
          %s182 = scalar_lea.sflag [#allocation6], %s181
          %s183 = sand.u32 %s62, 1
          %s184 = smul.addr %s183, 192
          %s185 = scalar_lea.vmem [#allocation5], %s184
          %s186 = smul.u32 8, %s18
          %s187 = ssub.s32 17, %s186
          %p188 = scmp.lt.s32.totalorder %s187, 8
          %s189 = scalar_select %p188, %s187, 8
          %s190 = smul.u32 128, %s189
          %s191 = smul.u32 %s190, 3
          %s193 = ssub.s32 3072, %s191
          %194 = vsyncadd %s182, %s193
          %p195 = scmp.ne.s32.totalorder 0, %s191
          %s196 = smul.addr %s186, 3
          %s197 = smul.addr %s196, 128
          %s198 = scalar_lea.hbm %s1, %s197
          %s199 = smul.u32 %s189, 3
          %s200 = smul.u32 8, %s199
          %s201 = sshll.u32 %s185, 4
          %s202 = int_to_ptr.vmem [resolvable:$true] %s201
          %s203 = sshll.u32 %s200, 4
          %207 = dma.hbm_to_vmem [thread:$0]  (%p195), %s198, %s203, %s202, %s182, 128, 128, 8
        $region24: #{tpu_custom_call.1} parent=15 // pred_fallthru
          _
        // Predicated region
        $region25: #{tpu_custom_call.1} parent=15 // pred_check
          %p208 = pneg %p102
        $region26: #{tpu_custom_call.1} parent=15 // pred_check_branch
          %210 = sbr.rel (%p208) target = $region28
        $region27: #{tpu_custom_call.1} parent=15 // pred_region
          %s211 = sand.u32 %s18, 1
          %s212 = scalar_lea.sflag [#allocation6], %s211
          %s213 = sand.u32 %s92, 1
          %s214 = smul.addr %s213, 24
          %s215 = scalar_lea.vmem [#allocation7], %s214
          %s216 = sadd.s32 %s18, 1
          %s217 = smul.u32 %s216, 8
          %s219 = ssub.s32 384, 384
          %220 = vsyncadd %s212, %s219
          %s221 = smul.addr %s217, 3
          %s222 = smul.addr %s221, 128
          %s223 = scalar_lea.hbm %s2, %s222
          %s224 = sshll.u32 %s215, 4
          %s225 = int_to_ptr.vmem [resolvable:$true] %s224
          %230 = dma.hbm_to_vmem [thread:$0]  %s223, 384, %s225, %s212, 128, 128, 8
        $region28: #{tpu_custom_call.1} parent=15 // pred_fallthru
          _
      $region16: #{tpu_custom_call.1} parent=5 // pred_fallthru
        _
      %p231 = scmp.le.s32.totalorder 1, %s18
      %p232 = scmp.lt.s32.totalorder %s18, 3
      %p233 = pnand %p231, %p232
      %p234 = pneg %p233
      // Predicated region
      $region29: #{tpu_custom_call.1} parent=5 // pred_check
        _
      $region30: #{tpu_custom_call.1} parent=5 // pred_check_branch
        %236 = sbr.rel (%p233) target = $region32
      $region31: #{tpu_custom_call.1} parent=5 // pred_region
        %s237 = ssub.s32 %s18, 1
        %s238 = sand.u32 %s39, 1
        %s239 = scalar_lea.sflag [#allocation3], %s238
        %s240 = sand.u32 %s39, 1
        %s241 = smul.addr %s240, 24
        %s242 = scalar_lea.vmem [#allocation2], %s241
        // Predicated region
        $region33: #{tpu_custom_call.1} parent=31 // pred_check
          %p243 = pneg %p52
        $region34: #{tpu_custom_call.1} parent=31 // pred_check_branch
          %245 = sbr.rel (%p243) target = $region36
        $region35: #{tpu_custom_call.1} parent=31 // pred_region
          %246 = dma.done %s239, 384
        $region36: #{tpu_custom_call.1} parent=31 // pred_fallthru
          _
        %s247 = sand.u32 %s23, 1
        %s248 = scalar_lea.sflag [#allocation6], %s247
        %s249 = sand.u32 %s65, 1
        %s250 = smul.addr %s249, 192
        %s251 = scalar_lea.vmem [#allocation5], %s250
        // Predicated region
        $region37: #{tpu_custom_call.1} parent=31 // pred_check
          %p252 = pneg %p78
        $region38: #{tpu_custom_call.1} parent=31 // pred_check_branch
          %254 = sbr.rel (%p252) target = $region40
        $region39: #{tpu_custom_call.1} parent=31 // pred_region
          %255 = dma.done %s248, 3072
        $region40: #{tpu_custom_call.1} parent=31 // pred_fallthru
          _
        %s256 = sand.u32 %s23, 1
        %s257 = scalar_lea.sflag [#allocation6], %s256
        %s258 = sand.u32 %s95, 1
        %s259 = smul.addr %s258, 24
        %s260 = scalar_lea.vmem [#allocation7], %s259
        // Predicated region
        $region41: #{tpu_custom_call.1} parent=31 // pred_check
          %p261 = pneg %p108
        $region42: #{tpu_custom_call.1} parent=31 // pred_check_branch
          %263 = sbr.rel (%p261) target = $region44
        $region43: #{tpu_custom_call.1} parent=31 // pred_region
          %264 = dma.done %s257, 384
        $region44: #{tpu_custom_call.1} parent=31 // pred_fallthru
          _
        %s265 = sand.u32 %s39, 1
        %s266 = scalar_lea.sflag [#allocation3], %s265
        %s267 = sand.u32 %s39, 1
        %s268 = smul.addr %s267, 24
        %s269 = scalar_lea.vmem [#allocation2], %s268
        %p270 = pneg %p52
        %p271 = pneg %p49
        %s272 = sand.u32 %s23, 1
        %s273 = scalar_lea.sflag [#allocation6], %s272
        %s274 = sand.u32 %s65, 1
        %s275 = smul.addr %s274, 192
        %s276 = scalar_lea.vmem [#allocation5], %s275
        %p277 = pneg %p78
        %p278 = pneg %p75
        %s279 = sand.u32 %s23, 1
        %s280 = scalar_lea.sflag [#allocation6], %s279
        %s281 = sand.u32 %s95, 1
        %s282 = smul.addr %s281, 24
        %s283 = scalar_lea.vmem [#allocation7], %s282
        %p284 = pneg %p108
        %p285 = pneg %p105
        %p286 = pneg %p134
        %p287 = pneg %p131
        %s288 = sand.u32 %s121, 1
        %s289 = scalar_lea.sflag [#allocation4], %s288
        %s290 = sand.u32 %s121, 1
        %s291 = smul.addr %s290, 8
        %s292 = scalar_lea.vmem [#allocation8], %s291
        %s293 = smul.u32 %s23, 8
        %s294 = ssub.s32 %s293, 1
        %p295 = scmp.gt.s32.totalorder %s294, 0
        %s296 = scalar_select %p295, %s294, 0
        %s297 = smul.u32 8, %s23
        %s298 = ssub.s32 17, %s297
        %p299 = scmp.lt.s32.totalorder %s298, 8
        %s300 = scalar_select %p299, %s298, 8
        %s301 = smul.u32 128, %s300
        %s302 = smul.u32 %s301, 3
        %s303 = sadd.s32 %s23, 1
        %s304 = smul.u32 %s303, 8
        %p305 = scmp.gt.s32.totalorder %s23, 0
        %v306 = vld [vmem:[%s242] sm:$0xff]
        %v307 = vld [vmem:[%s242 + $0x8] sm:$0xff]
        %v308 = vld [vmem:[%s242 + $0x10] sm:$0xff]
        %s309 = scalar_select %p305, 1, 0
        %v310 = vstv %s309
        %vm311 = vcmp.eq.s32.totalorder %v310, 1
        %v312 = vsel %vm311, %v306, 0.0
        %v313 = vsel %vm311, %v307, 0.0
        %v314 = vsel %vm311, %v308, 0.0
        %v315 = vld [vmem:[%s251] sm:$0xff]
        %v316 = vld [vmem:[%s251 + $0x8] sm:$0xff]
        %v317 = vld [vmem:[%s251 + $0x10] sm:$0xff]
        %v318 = vld [vmem:[%s251 + $0x18] sm:$0xff]
        %v319 = vld [vmem:[%s251 + $0x20] sm:$0xff]
        %v320 = vld [vmem:[%s251 + $0x28] sm:$0xff]
        %v321 = vld [vmem:[%s251 + $0x30] sm:$0xff]
        %v322 = vld [vmem:[%s251 + $0x38] sm:$0xff]
        %v323 = vld [vmem:[%s251 + $0x40] sm:$0xff]
        %v324 = vld [vmem:[%s251 + $0x48] sm:$0xff]
        %v325 = vld [vmem:[%s251 + $0x50] sm:$0xff]
        %v326 = vld [vmem:[%s251 + $0x58] sm:$0xff]
        %v327 = vld [vmem:[%s251 + $0x60] sm:$0xff]
        %v328 = vld [vmem:[%s251 + $0x68] sm:$0xff]
        %v329 = vld [vmem:[%s251 + $0x70] sm:$0xff]
        %v330 = vld [vmem:[%s251 + $0x78] sm:$0xff]
        %v331 = vld [vmem:[%s251 + $0x80] sm:$0xff]
        %v332 = vld [vmem:[%s251 + $0x88] sm:$0xff]
        %v333 = vld [vmem:[%s251 + $0x90] sm:$0xff]
        %v334 = vld [vmem:[%s251 + $0x98] sm:$0xff]
        %v335 = vld [vmem:[%s251 + $0xa0] sm:$0xff]
        %v336 = vld [vmem:[%s251 + $0xa8] sm:$0xff]
        %v337 = vld [vmem:[%s251 + $0xb0] sm:$0xff]
        %v338 = vld [vmem:[%s251 + $0xb8] sm:$0xff]
        %v339 = vld [vmem:[%s260] sm:$0xff]
        %v340 = vld [vmem:[%s260 + $0x8] sm:$0xff]
        %v341 = vld [vmem:[%s260 + $0x10] sm:$0xff]
        %v342 = vmul.f32 %v312, %v312
        %v343 = vmul.f32 %v313, %v313
        %v344 = vmul.f32 %v314, %v314
        %v345 = vmul.f32 %v315, %v315
        %v346 = vmul.f32 %v316, %v316
        %v347 = vmul.f32 %v317, %v317
        %v348 = vmul.f32 %v318, %v318
        %v349 = vmul.f32 %v319, %v319
        %v350 = vmul.f32 %v320, %v320
        %v351 = vmul.f32 %v321, %v321
        %v352 = vmul.f32 %v322, %v322
        %v353 = vmul.f32 %v323, %v323
        %v354 = vmul.f32 %v324, %v324
        %v355 = vmul.f32 %v325, %v325
        %v356 = vmul.f32 %v326, %v326
        %v357 = vmul.f32 %v327, %v327
        %v358 = vmul.f32 %v328, %v328
        %v359 = vmul.f32 %v329, %v329
        %v360 = vmul.f32 %v330, %v330
        %v361 = vmul.f32 %v331, %v331
        %v362 = vmul.f32 %v332, %v332
        %v363 = vmul.f32 %v333, %v333
        %v364 = vmul.f32 %v334, %v334
        %v365 = vmul.f32 %v335, %v335
        %v366 = vmul.f32 %v336, %v336
        %v367 = vmul.f32 %v337, %v337
        %v368 = vmul.f32 %v338, %v338
        %v369 = vmul.f32 %v339, %v339
        %v370 = vmul.f32 %v340, %v340
        %v371 = vmul.f32 %v341, %v341
        %vm372 = vcmask 261120
        %v373 = vsel %vm372, %v342, 0.0
        %374 = vadd.xlane.f32.xlu0 %v373
        %v375 = vpop.xlane.xlu0 %374
        %v376 = vsel %vm372, %v343, 0.0
        %377 = vadd.xlane.f32.xlu0 %v376
        %v378 = vpop.xlane.xlu0 %377
        %v379 = vsel %vm372, %v344, 0.0
        %380 = vadd.xlane.f32.xlu0 %v379
        %v381 = vpop.xlane.xlu0 %380
        %v382 = vsel %vm372, %v345, 0.0
        %383 = vadd.xlane.f32.xlu0 %v382
        %v384 = vpop.xlane.xlu0 %383
        %v385 = vsel %vm372, %v346, 0.0
        %386 = vadd.xlane.f32.xlu0 %v385
        %v387 = vpop.xlane.xlu0 %386
        %v388 = vsel %vm372, %v347, 0.0
        %389 = vadd.xlane.f32.xlu0 %v388
        %v390 = vpop.xlane.xlu0 %389
        %v391 = vsel %vm372, %v348, 0.0
        %392 = vadd.xlane.f32.xlu0 %v391
        %v393 = vpop.xlane.xlu0 %392
        %v394 = vsel %vm372, %v349, 0.0
        %395 = vadd.xlane.f32.xlu0 %v394
        %v396 = vpop.xlane.xlu0 %395
        %v397 = vsel %vm372, %v350, 0.0
        %398 = vadd.xlane.f32.xlu0 %v397
        %v399 = vpop.xlane.xlu0 %398
        %v400 = vsel %vm372, %v351, 0.0
        %401 = vadd.xlane.f32.xlu0 %v400
        %v402 = vpop.xlane.xlu0 %401
        %v403 = vsel %vm372, %v352, 0.0
        %404 = vadd.xlane.f32.xlu0 %v403
        %v405 = vpop.xlane.xlu0 %404
        %v406 = vsel %vm372, %v353, 0.0
        %407 = vadd.xlane.f32.xlu0 %v406
        %v408 = vpop.xlane.xlu0 %407
        %v409 = vsel %vm372, %v354, 0.0
        %410 = vadd.xlane.f32.xlu0 %v409
        %v411 = vpop.xlane.xlu0 %410
        %v412 = vsel %vm372, %v355, 0.0
        %413 = vadd.xlane.f32.xlu0 %v412
        %v414 = vpop.xlane.xlu0 %413
        %v415 = vsel %vm372, %v356, 0.0
        %416 = vadd.xlane.f32.xlu0 %v415
        %v417 = vpop.xlane.xlu0 %416
        %v418 = vsel %vm372, %v357, 0.0
        %419 = vadd.xlane.f32.xlu0 %v418
        %v420 = vpop.xlane.xlu0 %419
        %v421 = vsel %vm372, %v358, 0.0
        %422 = vadd.xlane.f32.xlu0 %v421
        %v423 = vpop.xlane.xlu0 %422
        %v424 = vsel %vm372, %v359, 0.0
        %425 = vadd.xlane.f32.xlu0 %v424
        %v426 = vpop.xlane.xlu0 %425
        %v427 = vsel %vm372, %v360, 0.0
        %428 = vadd.xlane.f32.xlu0 %v427
        %v429 = vpop.xlane.xlu0 %428
        %v430 = vsel %vm372, %v361, 0.0
        %431 = vadd.xlane.f32.xlu0 %v430
        %v432 = vpop.xlane.xlu0 %431
        %v433 = vsel %vm372, %v362, 0.0
        %434 = vadd.xlane.f32.xlu0 %v433
        %v435 = vpop.xlane.xlu0 %434
        %v436 = vsel %vm372, %v363, 0.0
        %437 = vadd.xlane.f32.xlu0 %v436
        %v438 = vpop.xlane.xlu0 %437
        %v439 = vsel %vm372, %v364, 0.0
        %440 = vadd.xlane.f32.xlu0 %v439
        %v441 = vpop.xlane.xlu0 %440
        %v442 = vsel %vm372, %v365, 0.0
        %443 = vadd.xlane.f32.xlu0 %v442
        %v444 = vpop.xlane.xlu0 %443
        %v445 = vsel %vm372, %v366, 0.0
        %446 = vadd.xlane.f32.xlu0 %v445
        %v447 = vpop.xlane.xlu0 %446
        %v448 = vsel %vm372, %v367, 0.0
        %449 = vadd.xlane.f32.xlu0 %v448
        %v450 = vpop.xlane.xlu0 %449
        %v451 = vsel %vm372, %v368, 0.0
        %452 = vadd.xlane.f32.xlu0 %v451
        %v453 = vpop.xlane.xlu0 %452
        %v454 = vsel %vm372, %v369, 0.0
        %455 = vadd.xlane.f32.xlu0 %v454
        %v456 = vpop.xlane.xlu0 %455
        %v457 = vsel %vm372, %v370, 0.0
        %458 = vadd.xlane.f32.xlu0 %v457
        %v459 = vpop.xlane.xlu0 %458
        %v460 = vsel %vm372, %v371, 0.0
        %461 = vadd.xlane.f32.xlu0 %v460
        %v462 = vpop.xlane.xlu0 %461
        %v463 = vmax.f32 %v375, 1e-16
        %v464 = vmax.f32 %v378, 1e-16
        %v465 = vmax.f32 %v381, 1e-16
        %v466 = vmax.f32 %v384, 1e-16
        %v467 = vmax.f32 %v387, 1e-16
        %v468 = vmax.f32 %v390, 1e-16
        %v469 = vmax.f32 %v393, 1e-16
        %v470 = vmax.f32 %v396, 1e-16
        %v471 = vmax.f32 %v399, 1e-16
        %v472 = vmax.f32 %v402, 1e-16
        %v473 = vmax.f32 %v405, 1e-16
        %v474 = vmax.f32 %v408, 1e-16
        %v475 = vmax.f32 %v411, 1e-16
        %v476 = vmax.f32 %v414, 1e-16
        %v477 = vmax.f32 %v417, 1e-16
        %v478 = vmax.f32 %v420, 1e-16
        %v479 = vmax.f32 %v423, 1e-16
        %v480 = vmax.f32 %v426, 1e-16
        %v481 = vmax.f32 %v429, 1e-16
        %v482 = vmax.f32 %v432, 1e-16
        %v483 = vmax.f32 %v435, 1e-16
        %v484 = vmax.f32 %v438, 1e-16
        %v485 = vmax.f32 %v441, 1e-16
        %v486 = vmax.f32 %v444, 1e-16
        %v487 = vmax.f32 %v447, 1e-16
        %v488 = vmax.f32 %v450, 1e-16
        %v489 = vmax.f32 %v453, 1e-16
        %v490 = vmax.f32 %v456, 1e-16
        %v491 = vmax.f32 %v459, 1e-16
        %v492 = vmax.f32 %v462, 1e-16
        %v493 = vrsqrt.pop %v463
        %v494 = vrsqrt.pop %v464
        %v495 = vrsqrt.pop %v465
        %v496 = vrsqrt.pop %v466
        %v497 = vrsqrt.pop %v467
        %v498 = vrsqrt.pop %v468
        %v499 = vrsqrt.pop %v469
        %v500 = vrsqrt.pop %v470
        %v501 = vrsqrt.pop %v471
        %v502 = vrsqrt.pop %v472
        %v503 = vrsqrt.pop %v473
        %v504 = vrsqrt.pop %v474
        %v505 = vrsqrt.pop %v475
        %v506 = vrsqrt.pop %v476
        %v507 = vrsqrt.pop %v477
        %v508 = vrsqrt.pop %v478
        %v509 = vrsqrt.pop %v479
        %v510 = vrsqrt.pop %v480
        %v511 = vrsqrt.pop %v481
        %v512 = vrsqrt.pop %v482
        %v513 = vrsqrt.pop %v483
        %v514 = vrsqrt.pop %v484
        %v515 = vrsqrt.pop %v485
        %v516 = vrsqrt.pop %v486
        %v517 = vrsqrt.pop %v487
        %v518 = vrsqrt.pop %v488
        %v519 = vrsqrt.pop %v489
        %v520 = vrsqrt.pop %v490
        %v521 = vrsqrt.pop %v491
        %v522 = vrsqrt.pop %v492
        %v523 = vmul.f32 %v312, %v493
        %v524 = vmul.f32 %v313, %v494
        %v525 = vmul.f32 %v314, %v495
        %v526 = vmul.f32 %v315, %v496
        %v527 = vmul.f32 %v316, %v497
        %v528 = vmul.f32 %v317, %v498
        %v529 = vmul.f32 %v318, %v499
        %v530 = vmul.f32 %v319, %v500
        %v531 = vmul.f32 %v320, %v501
        %v532 = vmul.f32 %v321, %v502
        %v533 = vmul.f32 %v322, %v503
        %v534 = vmul.f32 %v323, %v504
        %v535 = vmul.f32 %v324, %v505
        %v536 = vmul.f32 %v325, %v506
        %v537 = vmul.f32 %v326, %v507
        %v538 = vmul.f32 %v327, %v508
        %v539 = vmul.f32 %v328, %v509
        %v540 = vmul.f32 %v329, %v510
        %v541 = vmul.f32 %v330, %v511
        %v542 = vmul.f32 %v331, %v512
        %v543 = vmul.f32 %v332, %v513
        %v544 = vmul.f32 %v333, %v514
        %v545 = vmul.f32 %v334, %v515
        %v546 = vmul.f32 %v335, %v516
        %v547 = vmul.f32 %v336, %v517
        %v548 = vmul.f32 %v337, %v518
        %v549 = vmul.f32 %v338, %v519
        %v550 = vmul.f32 %v339, %v520
        %v551 = vmul.f32 %v340, %v521
        %v552 = vmul.f32 %v341, %v522
        %v553 = vadd.f32 %v523, %v529
        %v554 = vadd.f32 %v524, %v530
        %v555 = vadd.f32 %v525, %v531
        %v556 = vadd.f32 %v526, %v532
        %v557 = vadd.f32 %v527, %v533
        %v558 = vadd.f32 %v528, %v534
        %v559 = vadd.f32 %v529, %v535
        %v560 = vadd.f32 %v530, %v536
        %v561 = vadd.f32 %v531, %v537
        %v562 = vadd.f32 %v532, %v538
        %v563 = vadd.f32 %v533, %v539
        %v564 = vadd.f32 %v534, %v540
        %v565 = vadd.f32 %v535, %v541
        %v566 = vadd.f32 %v536, %v542
        %v567 = vadd.f32 %v537, %v543
        %v568 = vadd.f32 %v538, %v544
        %v569 = vadd.f32 %v539, %v545
        %v570 = vadd.f32 %v540, %v546
        %v571 = vadd.f32 %v541, %v547
        %v572 = vadd.f32 %v542, %v548
        %v573 = vadd.f32 %v543, %v549
        %v574 = vadd.f32 %v544, %v550
        %v575 = vadd.f32 %v545, %v551
        %v576 = vadd.f32 %v546, %v552
        %v577 = vrot.slane %v553, 7
        %v578 = vrot.slane %v556, 7
        %v579 = vrot.slane %v559, 7
        %v580 = vrot.slane %v562, 7
        %v581 = vrot.slane %v565, 7
        %v582 = vrot.slane %v568, 7
        %v583 = vrot.slane %v571, 7
        %v584 = vrot.slane %v574, 7
        %v585 = vrot.slane %v554, 7
        %v586 = vrot.slane %v557, 7
        %v587 = vrot.slane %v560, 7
        %v588 = vrot.slane %v563, 7
        %v589 = vrot.slane %v566, 7
        %v590 = vrot.slane %v569, 7
        %v591 = vrot.slane %v572, 7
        %v592 = vrot.slane %v575, 7
        %v593 = vrot.slane %v555, 7
        %v594 = vrot.slane %v558, 7
        %v595 = vrot.slane %v561, 7
        %v596 = vrot.slane %v564, 7
        %v597 = vrot.slane %v567, 7
        %v598 = vrot.slane %v570, 7
        %v599 = vrot.slane %v573, 7
        %v600 = vrot.slane %v576, 7
        %v601 = vlaneseq
        %v602 = vshrl.u32 %v601, 7
        %vm603 = vcmp.lt.s32.totalorder %v602, 1
        %v604 = vsel %vm603, %v585, %v593
        %v605 = vsel %vm603, %v586, %v594
        %v606 = vsel %vm603, %v587, %v595
        %v607 = vsel %vm603, %v588, %v596
        %v608 = vsel %vm603, %v589, %v597
        %v609 = vsel %vm603, %v590, %v598
        %v610 = vsel %vm603, %v591, %v599
        %v611 = vsel %vm603, %v592, %v600
        %v612 = vsel %vm603, %v577, %v585
        %v613 = vsel %vm603, %v578, %v586
        %v614 = vsel %vm603, %v579, %v587
        %v615 = vsel %vm603, %v580, %v588
        %v616 = vsel %vm603, %v581, %v589
        %v617 = vsel %vm603, %v582, %v590
        %v618 = vsel %vm603, %v583, %v591
        %v619 = vsel %vm603, %v584, %v592
        %v620 = vsel %vm603, %v593, %v577
        %v621 = vsel %vm603, %v594, %v578
        %v622 = vsel %vm603, %v595, %v579
        %v623 = vsel %vm603, %v596, %v580
        %v624 = vsel %vm603, %v597, %v581
        %v625 = vsel %vm603, %v598, %v582
        %v626 = vsel %vm603, %v599, %v583
        %v627 = vsel %vm603, %v600, %v584
        %v628 = vrot.slane %v553, 1
        %v629 = vrot.slane %v556, 1
        %v630 = vrot.slane %v559, 1
        %v631 = vrot.slane %v562, 1
        %v632 = vrot.slane %v565, 1
        %v633 = vrot.slane %v568, 1
        %v634 = vrot.slane %v571, 1
        %v635 = vrot.slane %v574, 1
        %v636 = vrot.slane %v554, 1
        %v637 = vrot.slane %v557, 1
        %v638 = vrot.slane %v560, 1
        %v639 = vrot.slane %v563, 1
        %v640 = vrot.slane %v566, 1
        %v641 = vrot.slane %v569, 1
        %v642 = vrot.slane %v572, 1
        %v643 = vrot.slane %v575, 1
        %v644 = vrot.slane %v555, 1
        %v645 = vrot.slane %v558, 1
        %v646 = vrot.slane %v561, 1
        %v647 = vrot.slane %v564, 1
        %v648 = vrot.slane %v567, 1
        %v649 = vrot.slane %v570, 1
        %v650 = vrot.slane %v573, 1
        %v651 = vrot.slane %v576, 1
        %vm652 = vcmp.lt.s32.totalorder %v602, 7
        %v653 = vsel %vm652, %v636, %v644
        %v654 = vsel %vm652, %v637, %v645
        %v655 = vsel %vm652, %v638, %v646
        %v656 = vsel %vm652, %v639, %v647
        %v657 = vsel %vm652, %v640, %v648
        %v658 = vsel %vm652, %v641, %v649
        %v659 = vsel %vm652, %v642, %v650
        %v660 = vsel %vm652, %v643, %v651
        %v661 = vsel %vm652, %v628, %v636
        %v662 = vsel %vm652, %v629, %v637
        %v663 = vsel %vm652, %v630, %v638
        %v664 = vsel %vm652, %v631, %v639
        %v665 = vsel %vm652, %v632, %v640
        %v666 = vsel %vm652, %v633, %v641
        %v667 = vsel %vm652, %v634, %v642
        %v668 = vsel %vm652, %v635, %v643
        %v669 = vsel %vm652, %v644, %v628
        %v670 = vsel %vm652, %v645, %v629
        %v671 = vsel %vm652, %v646, %v630
        %v672 = vsel %vm652, %v647, %v631
        %v673 = vsel %vm652, %v648, %v632
        %v674 = vsel %vm652, %v649, %v633
        %v675 = vsel %vm652, %v650, %v634
        %v676 = vsel %vm652, %v651, %v635
        %v677 = vadd.f32 %v620, %v661
        %v678 = vadd.f32 %v612, %v653
        %v679 = vadd.f32 %v604, %v669
        %v680 = vadd.f32 %v621, %v662
        %v681 = vadd.f32 %v613, %v654
        %v682 = vadd.f32 %v605, %v670
        %v683 = vadd.f32 %v622, %v663
        %v684 = vadd.f32 %v614, %v655
        %v685 = vadd.f32 %v606, %v671
        %v686 = vadd.f32 %v623, %v664
        %v687 = vadd.f32 %v615, %v656
        %v688 = vadd.f32 %v607, %v672
        %v689 = vadd.f32 %v624, %v665
        %v690 = vadd.f32 %v616, %v657
        %v691 = vadd.f32 %v608, %v673
        %v692 = vadd.f32 %v625, %v666
        %v693 = vadd.f32 %v617, %v658
        %v694 = vadd.f32 %v609, %v674
        %v695 = vadd.f32 %v626, %v667
        %v696 = vadd.f32 %v618, %v659
        %v697 = vadd.f32 %v610, %v675
        %v698 = vadd.f32 %v627, %v668
        %v699 = vadd.f32 %v619, %v660
        %v700 = vadd.f32 %v611, %v676
        %v701 = vmul.f32 %v526, %v677
        %v702 = vmul.f32 %v527, %v678
        %v703 = vmul.f32 %v528, %v679
        %v704 = vmul.f32 %v529, %v680
        %v705 = vmul.f32 %v530, %v681
        %v706 = vmul.f32 %v531, %v682
        %v707 = vmul.f32 %v532, %v683
        %v708 = vmul.f32 %v533, %v684
        %v709 = vmul.f32 %v534, %v685
        %v710 = vmul.f32 %v535, %v686
        %v711 = vmul.f32 %v536, %v687
        %v712 = vmul.f32 %v537, %v688
        %v713 = vmul.f32 %v538, %v689
        %v714 = vmul.f32 %v539, %v690
        %v715 = vmul.f32 %v540, %v691
        %v716 = vmul.f32 %v541, %v692
        %v717 = vmul.f32 %v542, %v693
        %v718 = vmul.f32 %v543, %v694
        %v719 = vmul.f32 %v544, %v695
        %v720 = vmul.f32 %v545, %v696
        %v721 = vmul.f32 %v546, %v697
        %v722 = vmul.f32 %v547, %v698
        %v723 = vmul.f32 %v548, %v699
        %v724 = vmul.f32 %v549, %v700
        %v725 = vsel %vm372, %v701, 0.0
        %726 = vadd.xlane.f32.xlu0 %v725
        %v727 = vpop.xlane.xlu0 %726
        %v728 = vsel %vm372, %v702, 0.0
        %729 = vadd.xlane.f32.xlu0 %v728
        %v730 = vpop.xlane.xlu0 %729
        %v731 = vsel %vm372, %v703, 0.0
        %732 = vadd.xlane.f32.xlu0 %v731
        %v733 = vpop.xlane.xlu0 %732
        %v734 = vsel %vm372, %v704, 0.0
        %735 = vadd.xlane.f32.xlu0 %v734
        %v736 = vpop.xlane.xlu0 %735
        %v737 = vsel %vm372, %v705, 0.0
        %738 = vadd.xlane.f32.xlu0 %v737
        %v739 = vpop.xlane.xlu0 %738
        %v740 = vsel %vm372, %v706, 0.0
        %741 = vadd.xlane.f32.xlu0 %v740
        %v742 = vpop.xlane.xlu0 %741
        %v743 = vsel %vm372, %v707, 0.0
        %744 = vadd.xlane.f32.xlu0 %v743
        %v745 = vpop.xlane.xlu0 %744
        %v746 = vsel %vm372, %v708, 0.0
        %747 = vadd.xlane.f32.xlu0 %v746
        %v748 = vpop.xlane.xlu0 %747
        %v749 = vsel %vm372, %v709, 0.0
        %750 = vadd.xlane.f32.xlu0 %v749
        %v751 = vpop.xlane.xlu0 %750
        %v752 = vsel %vm372, %v710, 0.0
        %753 = vadd.xlane.f32.xlu0 %v752
        %v754 = vpop.xlane.xlu0 %753
        %v755 = vsel %vm372, %v711, 0.0
        %756 = vadd.xlane.f32.xlu0 %v755
        %v757 = vpop.xlane.xlu0 %756
        %v758 = vsel %vm372, %v712, 0.0
        %759 = vadd.xlane.f32.xlu0 %v758
        %v760 = vpop.xlane.xlu0 %759
        %v761 = vsel %vm372, %v713, 0.0
        %762 = vadd.xlane.f32.xlu0 %v761
        %v763 = vpop.xlane.xlu0 %762
        %v764 = vsel %vm372, %v714, 0.0
        %765 = vadd.xlane.f32.xlu0 %v764
        %v766 = vpop.xlane.xlu0 %765
        %v767 = vsel %vm372, %v715, 0.0
        %768 = vadd.xlane.f32.xlu0 %v767
        %v769 = vpop.xlane.xlu0 %768
        %v770 = vsel %vm372, %v716, 0.0
        %771 = vadd.xlane.f32.xlu0 %v770
        %v772 = vpop.xlane.xlu0 %771
        %v773 = vsel %vm372, %v717, 0.0
        %774 = vadd.xlane.f32.xlu0 %v773
        %v775 = vpop.xlane.xlu0 %774
        %v776 = vsel %vm372, %v718, 0.0
        %777 = vadd.xlane.f32.xlu0 %v776
        %v778 = vpop.xlane.xlu0 %777
        %v779 = vsel %vm372, %v719, 0.0
        %780 = vadd.xlane.f32.xlu0 %v779
        %v781 = vpop.xlane.xlu0 %780
        %v782 = vsel %vm372, %v720, 0.0
        %783 = vadd.xlane.f32.xlu0 %v782
        %v784 = vpop.xlane.xlu0 %783
        %v785 = vsel %vm372, %v721, 0.0
        %786 = vadd.xlane.f32.xlu0 %v785
        %v787 = vpop.xlane.xlu0 %786
        %v788 = vsel %vm372, %v722, 0.0
        %789 = vadd.xlane.f32.xlu0 %v788
        %v790 = vpop.xlane.xlu0 %789
        %v791 = vsel %vm372, %v723, 0.0
        %792 = vadd.xlane.f32.xlu0 %v791
        %v793 = vpop.xlane.xlu0 %792
        %v794 = vsel %vm372, %v724, 0.0
        %795 = vadd.xlane.f32.xlu0 %v794
        %v796 = vpop.xlane.xlu0 %795
        %v821 = vlaneseq
        %v822 = vand.u32 %v821, 127
        %v823 = vlaneseq
        %v824 = vshrl.u32 %v823, 7
        %v825 = vsub.s32 %v822, %v824
        %v826 = vrot.slane %v727, %v825
        %v827 = vadd.s32 %v822, 4294967288
        %v828 = vlaneseq
        %v829 = vshrl.u32 %v828, 7
        %v830 = vsub.s32 %v827, %v829
        %v831 = vrot.slane %v730, %v830
        %vm832 = vcmask 130112
        %v833 = vsel %vm832, %v831, %v826
        %v834 = vadd.s32 %v822, 4294967280
        %v835 = vlaneseq
        %v836 = vshrl.u32 %v835, 7
        %v837 = vsub.s32 %v834, %v836
        %v838 = vrot.slane %v733, %v837
        %vm839 = vcmask 195712
        %v840 = vsel %vm839, %v838, %v833
        %v841 = vlaneseq
        %v842 = vshrl.u32 %v841, 7
        %v843 = vsub.s32 %v822, %v842
        %v844 = vrot.slane %v736, %v843
        %v845 = vlaneseq
        %v846 = vshrl.u32 %v845, 7
        %v847 = vsub.s32 %v827, %v846
        %v848 = vrot.slane %v739, %v847
        %v849 = vsel %vm832, %v848, %v844
        %v850 = vlaneseq
        %v851 = vshrl.u32 %v850, 7
        %v852 = vsub.s32 %v834, %v851
        %v853 = vrot.slane %v742, %v852
        %v854 = vsel %vm839, %v853, %v849
        %v855 = vlaneseq
        %v856 = vshrl.u32 %v855, 7
        %v857 = vsub.s32 %v822, %v856
        %v858 = vrot.slane %v745, %v857
        %v859 = vlaneseq
        %v860 = vshrl.u32 %v859, 7
        %v861 = vsub.s32 %v827, %v860
        %v862 = vrot.slane %v748, %v861
        %v863 = vsel %vm832, %v862, %v858
        %v864 = vlaneseq
        %v865 = vshrl.u32 %v864, 7
        %v866 = vsub.s32 %v834, %v865
        %v867 = vrot.slane %v751, %v866
        %v868 = vsel %vm839, %v867, %v863
        %v869 = vlaneseq
        %v870 = vshrl.u32 %v869, 7
        %v871 = vsub.s32 %v822, %v870
        %v872 = vrot.slane %v754, %v871
        %v873 = vlaneseq
        %v874 = vshrl.u32 %v873, 7
        %v875 = vsub.s32 %v827, %v874
        %v876 = vrot.slane %v757, %v875
        %v877 = vsel %vm832, %v876, %v872
        %v878 = vlaneseq
        %v879 = vshrl.u32 %v878, 7
        %v880 = vsub.s32 %v834, %v879
        %v881 = vrot.slane %v760, %v880
        %v882 = vsel %vm839, %v881, %v877
        %v883 = vlaneseq
        %v884 = vshrl.u32 %v883, 7
        %v885 = vsub.s32 %v822, %v884
        %v886 = vrot.slane %v763, %v885
        %v887 = vlaneseq
        %v888 = vshrl.u32 %v887, 7
        %v889 = vsub.s32 %v827, %v888
        %v890 = vrot.slane %v766, %v889
        %v891 = vsel %vm832, %v890, %v886
        %v892 = vlaneseq
        %v893 = vshrl.u32 %v892, 7
        %v894 = vsub.s32 %v834, %v893
        %v895 = vrot.slane %v769, %v894
        %v896 = vsel %vm839, %v895, %v891
        %v897 = vlaneseq
        %v898 = vshrl.u32 %v897, 7
        %v899 = vsub.s32 %v822, %v898
        %v900 = vrot.slane %v772, %v899
        %v901 = vlaneseq
        %v902 = vshrl.u32 %v901, 7
        %v903 = vsub.s32 %v827, %v902
        %v904 = vrot.slane %v775, %v903
        %v905 = vsel %vm832, %v904, %v900
        %v906 = vlaneseq
        %v907 = vshrl.u32 %v906, 7
        %v908 = vsub.s32 %v834, %v907
        %v909 = vrot.slane %v778, %v908
        %v910 = vsel %vm839, %v909, %v905
        %v911 = vlaneseq
        %v912 = vshrl.u32 %v911, 7
        %v913 = vsub.s32 %v822, %v912
        %v914 = vrot.slane %v781, %v913
        %v915 = vlaneseq
        %v916 = vshrl.u32 %v915, 7
        %v917 = vsub.s32 %v827, %v916
        %v918 = vrot.slane %v784, %v917
        %v919 = vsel %vm832, %v918, %v914
        %v920 = vlaneseq
        %v921 = vshrl.u32 %v920, 7
        %v922 = vsub.s32 %v834, %v921
        %v923 = vrot.slane %v787, %v922
        %v924 = vsel %vm839, %v923, %v919
        %v925 = vlaneseq
        %v926 = vshrl.u32 %v925, 7
        %v927 = vsub.s32 %v822, %v926
        %v928 = vrot.slane %v790, %v927
        %v929 = vlaneseq
        %v930 = vshrl.u32 %v929, 7
        %v931 = vsub.s32 %v827, %v930
        %v932 = vrot.slane %v793, %v931
        %v933 = vsel %vm832, %v932, %v928
        %v934 = vlaneseq
        %v935 = vshrl.u32 %v934, 7
        %v936 = vsub.s32 %v834, %v935
        %v937 = vrot.slane %v796, %v936
        %v938 = vsel %vm839, %v937, %v933
        %vm939 = vcmask 1041409
        %v940 = vsel %vm939, %v854, %v840
        %vm941 = vcmask 1042434
        %v942 = vsel %vm941, %v868, %v940
        %vm943 = vcmask 1043459
        %v944 = vsel %vm943, %v882, %v942
        %vm945 = vcmask 1044484
        %v946 = vsel %vm945, %v896, %v944
        %vm947 = vcmask 1045509
        %v948 = vsel %vm947, %v910, %v946
        %vm949 = vcmask 1046534
        %v950 = vsel %vm949, %v924, %v948
        %vm951 = vcmask 1047559
        %v952 = vsel %vm951, %v938, %v950
        %vm954 = vcmask 195584
        %955 = vst.msk [vmem:[%s292] sm:$0xff] %vm954, %v952
        %s956 = sand.u32 %s121, 1
        %s957 = scalar_lea.sflag [#allocation4], %s956
        %s958 = sand.u32 %s121, 1
        %s959 = smul.addr %s958, 8
        %s960 = scalar_lea.vmem [#allocation8], %s959
        // Predicated region
        $region45: #{tpu_custom_call.1} parent=31 // pred_check
          %p961 = pneg %p131
        $region46: #{tpu_custom_call.1} parent=31 // pred_check_branch
          %963 = sbr.rel (%p961) target = $region48
        $region47: #{tpu_custom_call.1} parent=31 // pred_region
          %s965 = ssub.s32 128, 128
          %966 = vsyncadd %s957, %s965
          %s967 = smul.addr %s23, 128
          %s968 = scalar_lea.hbm %s3, %s967
          %s970 = sshll.u32 %s960, 4
          %s971 = int_to_ptr.vmem [resolvable:$true] %s970
          %973 = dma.vmem_to_hbm [thread:$0]  %s971, 128, %s968, %s957
        $region48: #{tpu_custom_call.1} parent=31 // pred_fallthru
          _
      $region32: #{tpu_custom_call.1} parent=5 // pred_fallthru
        _
      %p974 = scmp.le.s32.totalorder 2, %s18
      // Predicated region
      $region49: #{tpu_custom_call.1} parent=5 // pred_check
        %p975 = pneg %p974
      $region50: #{tpu_custom_call.1} parent=5 // pred_check_branch
        %977 = sbr.rel (%p975) target = $region52
      $region51: #{tpu_custom_call.1} parent=5 // pred_region
        %s978 = ssub.s32 %s18, 2
        // Predicated region
        $region53: #{tpu_custom_call.1} parent=51 // pred_check
          %p979 = pneg %p137
        $region54: #{tpu_custom_call.1} parent=51 // pred_check_branch
          %981 = sbr.rel (%p979) target = $region56
        $region55: #{tpu_custom_call.1} parent=51 // pred_region
          %s982 = sand.u32 %s122, 1
          %s983 = scalar_lea.sflag [#allocation4], %s982
          %s984 = sand.u32 %s122, 1
          %s985 = smul.addr %s984, 8
          %s986 = scalar_lea.vmem [#allocation8], %s985
          %987 = dma.done %s983, 128
        $region56: #{tpu_custom_call.1} parent=51 // pred_fallthru
          _
      $region52: #{tpu_custom_call.1} parent=5 // pred_fallthru
        _
    $region6: #{tpu_custom_call.1} parent=1 // loop_footer
      %s22 = sadd.s32 1, %s18
    $region7: #{tpu_custom_call.1} parent=1 // loop_footer_branch
      %17 = sbr.rel target = $region3
    $region8: #{tpu_custom_call.1} parent=1 // loop_exit
      _
    %988 = vsyncpa [#allocation3], 1
    %s989 = scalar_lea.sflag [#allocation3], 1
    %990 = vsyncpa %s989, 1
    %991 = vsyncpa [#allocation6], 1
    %s992 = scalar_lea.sflag [#allocation6], 1
    %993 = vsyncpa %s992, 1
    %994 = vsyncpa [#allocation4], 1
    %s995 = scalar_lea.sflag [#allocation4], 1
    %996 = vsyncpa %s995, 1

</llo_original>
